<compile_context>
chip_gen: v7x
topology: tpu7x:2x2x1
jax: 0.10.0
libtpu: 0.0.40
codegen_flags: <defaults>
</compile_context>

<pallas_src>
import numpy as np
import jax
import jax.numpy as jnp
from jax.experimental import pallas as pl
from jax.experimental.pallas import tpu as pltpu

# ----- module hyper-parameters (from __init__) ------------------------------
ORDER = 3
NUM_KNOTS = 8
KNOTS = np.linspace(0.0, 1.0, NUM_KNOTS + 2 * ORDER)      # len 14, strictly increasing
N_BASIS = len(KNOTS) - ORDER - 1                           # 10 bases actually used
N_COEF = NUM_KNOTS + ORDER                                 # 11 (last one unused, scipy semantics)
N_INT = N_BASIS - ORDER                                    # 7 evaluation intervals (mu in [3, 9])

LANES = 128
ROW_ALIGN = 8  # sublane granularity for f32

# Interval boundaries / left knots, baked into the kernel as Python constants.
_T_BOUND = tuple(float(v) for v in KNOTS[ORDER + 1:N_BASIS])   # t[4..9]  (6 boundaries)
_T_LEFT = tuple(float(v) for v in KNOTS[ORDER:N_BASIS])        # t[3..9]  (7 left knots)


# ----- static basis -> local-polynomial matrix (host, float64, built once) ----
def _build_local_poly_matrix():
    """M[i, p, j] = coefficient of u**p of basis function j restricted to interval
    [t[ORDER+i], t[ORDER+i+1]), with u = x - t[ORDER+i].  Running Cox-de Boor from
    the interval indicator with unclamped x gives exactly the local polynomial
    piece, i.e. scipy's extrapolate=True behaviour once the interval is clamped."""
    t = KNOTS.astype(np.float64)
    k = ORDER
    M = np.zeros((N_INT, k + 1, N_BASIS), np.float64)

    def mul_linear(p, a, b):
        # (a*u + b) * p(u), truncated to degree k (exact: input degree <= k-1)
        out = np.zeros(k + 1)
        out[1:] += a * p[:-1]
        out += b * p
        return out

    for i in range(N_INT):
        mu = ORDER + i
        tl = t[mu]
        polys = [np.zeros(k + 1) for _ in range(len(t) - 1)]
        polys[mu][0] = 1.0                       # degree-0 indicator of interval mu
        for r in range(1, k + 1):
            new = []
            for j in range(len(t) - 1 - r):
                d1 = t[j + r] - t[j]
                left = mul_linear(polys[j], 1.0 / d1, (tl - t[j]) / d1)
                d2 = t[j + r + 1] - t[j + 1]
                right = mul_linear(polys[j + 1], -1.0 / d2, (t[j + r + 1] - tl) / d2)
                new.append(left + right)
            polys = new
        for j in range(N_BASIS):
            M[i, :, j] = polys[j]
    return M


_M = _build_local_poly_matrix()
# sanity: the 4 bases alive on each interval form a partition of unity
assert np.allclose(_M.sum(axis=2), np.tile(np.array([1.0, 0.0, 0.0, 0.0]), (N_INT, 1)), atol=1e-9)
_M_FLAT = jnp.asarray(_M.reshape(N_INT * (ORDER + 1), N_BASIS), dtype=jnp.float32)  # (28, 10)


# ----- kernel ----------------------------------------------------------------
def _spline_kernel(table_ref, x_ref, o_ref):
    """Per-interval cubic (local Horner form) on one (block_rows, 128) tile.

    table_ref: SMEM f32[28], layout table[i*4 + p] = coeff of u**p on interval i.
    """
    x = x_ref[...].astype(jnp.float32)

    # 6 compares against the interior knots; masks are reused by every select
    # chain below.  (x >= knot) gives right-continuous interval selection and,
    # combined with the clamped first/last interval, scipy's extrapolate=True.
    masks = [x >= b for b in _T_BOUND]

    def pick(vals):  # 7-way select, vals[i] belongs to interval i (mu = ORDER + i)
        v = jnp.where(masks[0], vals[1], vals[0])
        for i in range(1, N_INT - 1):
            v = jnp.where(masks[i], vals[i + 1], v)
        return v

    c3 = pick([table_ref[i * 4 + 3] for i in range(N_INT)])
    c2 = pick([table_ref[i * 4 + 2] for i in range(N_INT)])
    c1 = pick([table_ref[i * 4 + 1] for i in range(N_INT)])
    c0 = pick([table_ref[i * 4 + 0] for i in range(N_INT)])

    u = x - pick(list(_T_LEFT))                       # local coordinate
    y = ((c3 * u + c2) * u + c1) * u + c0             # Horner
    o_ref[...] = y.astype(o_ref.dtype)


# ----- wrapper ----------------------------------------------------------------
def _round_up(v, m):
    return ((v + m - 1) // m) * m


def learnable_spline_activation(x, coefficients, *, block_rows=1024):
    """coefficients: f32[N_COEF]; x: any shape, any float dtype."""
    orig_shape, orig_dtype = x.shape, x.dtype
    total = x.size

    rows = _round_up(total, LANES) // LANES
    # Clamp the block so tiny inputs are not over-padded, and aim for >= 2 grid
    # steps so both v7x TensorCores get work when there is enough data.
    blk = min(block_rows, _round_up(max(rows // 2, 1), ROW_ALIGN))
    blk = max(ROW_ALIGN, blk)
    rows_p = _round_up(rows, blk)

    xf = jnp.ravel(x)
    pad = rows_p * LANES - total
    if pad:
        xf = jnp.pad(xf, (0, pad))
    x2 = xf.reshape(rows_p, LANES)

    # 28-entry per-interval cubic table = static knot matrix @ learnable coeffs.
    table = jnp.dot(_M_FLAT, coefficients[:N_BASIS].astype(jnp.float32))

    out = pl.pallas_call(
        _spline_kernel,
        out_shape=jax.ShapeDtypeStruct((rows_p, LANES), orig_dtype),
        grid_spec=pltpu.PrefetchScalarGridSpec(
            num_scalar_prefetch=0,
            grid=(rows_p // blk,),
            in_specs=[
                pl.BlockSpec(memory_space=pltpu.MemorySpace.SMEM),       # 28-scalar table
                pl.BlockSpec((blk, LANES), lambda i: (i, 0)),            # x block
            ],
            out_specs=pl.BlockSpec((blk, LANES), lambda i: (i, 0)),
        ),
        compiler_params=pltpu.CompilerParams(dimension_semantics=("parallel",)),
    )(table, x2)

    return out.reshape(-1)[:total].reshape(orig_shape)


# ----- pure numpy reference (de Boor's algorithm, float64) -------------------
def _ref_spline(x_np, coef_np):
    t = KNOTS
    k = ORDER
    n = N_BASIS
    xf = x_np.reshape(-1).astype(np.float64)
    c = coef_np.astype(np.float64)
    cnt = np.sum(xf[:, None] >= t[None, :], axis=1)
    mu = np.clip(cnt - 1, k, n - 1)
    out = np.empty_like(xf)
    for idx in range(xf.shape[0]):
        xv, m = xf[idx], int(mu[idx])
        d = [c[j + m - k] for j in range(k + 1)]
        for r in range(1, k + 1):
            for j in range(k, r - 1, -1):
                alpha = (xv - t[j + m - k]) / (t[j + 1 + m - r] - t[j + m - k])
                d[j] = (1.0 - alpha) * d[j - 1] + alpha * d[j]
        out[idx] = d[k]
    return out.reshape(x_np.shape)


if __name__ == "__main__":
    key = jax.random.PRNGKey(0)
    kx, kc = jax.random.split(key)
    # NCHW input, values in [-1, 1] (like torch.linspace(-1, 1) driving the module)
    x = jax.random.uniform(kx, (2, 4, 16, 16), jnp.float32, minval=-1.0, maxval=1.0)
    # deterministic stand-in for nn.Parameter(torch.randn(num_knots + order))
    coefficients = jax.random.normal(kc, (N_COEF,), jnp.float32)

    spline = jax.jit(learnable_spline_activation)

    y = jax.block_until_ready(spline(x, coefficients))
    assert y.shape == x.shape and y.dtype == x.dtype
    ref = _ref_spline(np.asarray(x), np.asarray(coefficients))
    # Cubic *extrapolation* down to x = -1 carries intermediate terms of O(1e3),
    # so float32 vs. the float64 reference can differ by a few 1e-3 absolute where
    # terms cancel; values themselves range up to O(1e3), so this is still tight.
    np.testing.assert_allclose(np.asarray(y), ref, rtol=5e-3, atol=5e-3)

    # Non tile-aligned shape exercises the padding path of the wrapper.
    x_odd = jax.random.uniform(jax.random.PRNGKey(1), (3, 5, 7), jnp.float32,
                               minval=-1.0, maxval=1.0)
    y_odd = jax.block_until_ready(spline(x_odd, coefficients))
    assert y_odd.shape == x_odd.shape and y_odd.dtype == x_odd.dtype
    ref_odd = _ref_spline(np.asarray(x_odd), np.asarray(coefficients))
    np.testing.assert_allclose(np.asarray(y_odd), ref_odd, rtol=5e-3, atol=5e-3)

    print("KERNEL_OK")
</pallas_src>

<mosaic_0001>
module attributes {stable_mosaic.version = 11 : i64} {
  func.func @_spline_kernel(%arg0: i32, %arg1: memref<28xf32, #tpu.memory_space<smem>>, %arg2: memref<8x128xf32, #tpu.memory_space<vmem>>, %arg3: memref<8x128xf32, #tpu.memory_space<vmem>>) attributes {dimension_semantics = [#tpu.dimension_semantics<parallel>], iteration_bounds = array<i64: 2>, scalar_prefetch = 0 : i64, scratch_operands = 0 : i64, tpu.core_type = #tpu.core_type<tc>, window_params = [{transform_indices = @transform_0, window_bounds = array<i64: 28>}, {transform_indices = @transform_1, window_bounds = array<i64: 8, 128>}, {transform_indices = @transform_2, window_bounds = array<i64: 8, 128>}]} {
    %c0 = arith.constant 0 : index
    %c0_0 = arith.constant 0 : index
    %0 = vector.load %arg2[%c0, %c0_0] : memref<8x128xf32, #tpu.memory_space<vmem>>, vector<8x128xf32>
    %cst = arith.constant 0.307692319 : f32
    %1 = vector.broadcast %cst : f32 to vector<8x128xf32>
    %2 = arith.cmpf oge, %0, %1 : vector<8x128xf32>
    %cst_1 = arith.constant 0.384615391 : f32
    %3 = vector.broadcast %cst_1 : f32 to vector<8x128xf32>
    %4 = arith.cmpf oge, %0, %3 : vector<8x128xf32>
    %cst_2 = arith.constant 0.461538464 : f32
    %5 = vector.broadcast %cst_2 : f32 to vector<8x128xf32>
    %6 = arith.cmpf oge, %0, %5 : vector<8x128xf32>
    %cst_3 = arith.constant 0.538461566 : f32
    %7 = vector.broadcast %cst_3 : f32 to vector<8x128xf32>
    %8 = arith.cmpf oge, %0, %7 : vector<8x128xf32>
    %cst_4 = arith.constant 0.615384638 : f32
    %9 = vector.broadcast %cst_4 : f32 to vector<8x128xf32>
    %10 = arith.cmpf oge, %0, %9 : vector<8x128xf32>
    %cst_5 = arith.constant 0.692307711 : f32
    %11 = vector.broadcast %cst_5 : f32 to vector<8x128xf32>
    %12 = arith.cmpf oge, %0, %11 : vector<8x128xf32>
    %c3 = arith.constant 3 : index
    %13 = memref.load %arg1[%c3] : memref<28xf32, #tpu.memory_space<smem>>
    %c7 = arith.constant 7 : index
    %14 = memref.load %arg1[%c7] : memref<28xf32, #tpu.memory_space<smem>>
    %c11 = arith.constant 11 : index
    %15 = memref.load %arg1[%c11] : memref<28xf32, #tpu.memory_space<smem>>
    %c15 = arith.constant 15 : index
    %16 = memref.load %arg1[%c15] : memref<28xf32, #tpu.memory_space<smem>>
    %c19 = arith.constant 19 : index
    %17 = memref.load %arg1[%c19] : memref<28xf32, #tpu.memory_space<smem>>
    %c23 = arith.constant 23 : index
    %18 = memref.load %arg1[%c23] : memref<28xf32, #tpu.memory_space<smem>>
    %c27 = arith.constant 27 : index
    %19 = memref.load %arg1[%c27] : memref<28xf32, #tpu.memory_space<smem>>
    %20 = vector.broadcast %14 : f32 to vector<8x128xf32>
    %21 = vector.broadcast %13 : f32 to vector<8x128xf32>
    %22 = arith.select %2, %20, %21 : vector<8x128xi1>, vector<8x128xf32>
    %23 = vector.broadcast %15 : f32 to vector<8x128xf32>
    %24 = arith.select %4, %23, %22 : vector<8x128xi1>, vector<8x128xf32>
    %25 = vector.broadcast %16 : f32 to vector<8x128xf32>
    %26 = arith.select %6, %25, %24 : vector<8x128xi1>, vector<8x128xf32>
    %27 = vector.broadcast %17 : f32 to vector<8x128xf32>
    %28 = arith.select %8, %27, %26 : vector<8x128xi1>, vector<8x128xf32>
    %29 = vector.broadcast %18 : f32 to vector<8x128xf32>
    %30 = arith.select %10, %29, %28 : vector<8x128xi1>, vector<8x128xf32>
    %31 = vector.broadcast %19 : f32 to vector<8x128xf32>
    %32 = arith.select %12, %31, %30 : vector<8x128xi1>, vector<8x128xf32>
    %c2 = arith.constant 2 : index
    %33 = memref.load %arg1[%c2] : memref<28xf32, #tpu.memory_space<smem>>
    %c6 = arith.constant 6 : index
    %34 = memref.load %arg1[%c6] : memref<28xf32, #tpu.memory_space<smem>>
    %c10 = arith.constant 10 : index
    %35 = memref.load %arg1[%c10] : memref<28xf32, #tpu.memory_space<smem>>
    %c14 = arith.constant 14 : index
    %36 = memref.load %arg1[%c14] : memref<28xf32, #tpu.memory_space<smem>>
    %c18 = arith.constant 18 : index
    %37 = memref.load %arg1[%c18] : memref<28xf32, #tpu.memory_space<smem>>
    %c22 = arith.constant 22 : index
    %38 = memref.load %arg1[%c22] : memref<28xf32, #tpu.memory_space<smem>>
    %c26 = arith.constant 26 : index
    %39 = memref.load %arg1[%c26] : memref<28xf32, #tpu.memory_space<smem>>
    %40 = vector.broadcast %34 : f32 to vector<8x128xf32>
    %41 = vector.broadcast %33 : f32 to vector<8x128xf32>
    %42 = arith.select %2, %40, %41 : vector<8x128xi1>, vector<8x128xf32>
    %43 = vector.broadcast %35 : f32 to vector<8x128xf32>
    %44 = arith.select %4, %43, %42 : vector<8x128xi1>, vector<8x128xf32>
    %45 = vector.broadcast %36 : f32 to vector<8x128xf32>
    %46 = arith.select %6, %45, %44 : vector<8x128xi1>, vector<8x128xf32>
    %47 = vector.broadcast %37 : f32 to vector<8x128xf32>
    %48 = arith.select %8, %47, %46 : vector<8x128xi1>, vector<8x128xf32>
    %49 = vector.broadcast %38 : f32 to vector<8x128xf32>
    %50 = arith.select %10, %49, %48 : vector<8x128xi1>, vector<8x128xf32>
    %51 = vector.broadcast %39 : f32 to vector<8x128xf32>
    %52 = arith.select %12, %51, %50 : vector<8x128xi1>, vector<8x128xf32>
    %c1 = arith.constant 1 : index
    %53 = memref.load %arg1[%c1] : memref<28xf32, #tpu.memory_space<smem>>
    %c5 = arith.constant 5 : index
    %54 = memref.load %arg1[%c5] : memref<28xf32, #tpu.memory_space<smem>>
    %c9 = arith.constant 9 : index
    %55 = memref.load %arg1[%c9] : memref<28xf32, #tpu.memory_space<smem>>
    %c13 = arith.constant 13 : index
    %56 = memref.load %arg1[%c13] : memref<28xf32, #tpu.memory_space<smem>>
    %c17 = arith.constant 17 : index
    %57 = memref.load %arg1[%c17] : memref<28xf32, #tpu.memory_space<smem>>
    %c21 = arith.constant 21 : index
    %58 = memref.load %arg1[%c21] : memref<28xf32, #tpu.memory_space<smem>>
    %c25 = arith.constant 25 : index
    %59 = memref.load %arg1[%c25] : memref<28xf32, #tpu.memory_space<smem>>
    %60 = vector.broadcast %54 : f32 to vector<8x128xf32>
    %61 = vector.broadcast %53 : f32 to vector<8x128xf32>
    %62 = arith.select %2, %60, %61 : vector<8x128xi1>, vector<8x128xf32>
    %63 = vector.broadcast %55 : f32 to vector<8x128xf32>
    %64 = arith.select %4, %63, %62 : vector<8x128xi1>, vector<8x128xf32>
    %65 = vector.broadcast %56 : f32 to vector<8x128xf32>
    %66 = arith.select %6, %65, %64 : vector<8x128xi1>, vector<8x128xf32>
    %67 = vector.broadcast %57 : f32 to vector<8x128xf32>
    %68 = arith.select %8, %67, %66 : vector<8x128xi1>, vector<8x128xf32>
    %69 = vector.broadcast %58 : f32 to vector<8x128xf32>
    %70 = arith.select %10, %69, %68 : vector<8x128xi1>, vector<8x128xf32>
    %71 = vector.broadcast %59 : f32 to vector<8x128xf32>
    %72 = arith.select %12, %71, %70 : vector<8x128xi1>, vector<8x128xf32>
    %c0_6 = arith.constant 0 : index
    %73 = memref.load %arg1[%c0_6] : memref<28xf32, #tpu.memory_space<smem>>
    %c4 = arith.constant 4 : index
    %74 = memref.load %arg1[%c4] : memref<28xf32, #tpu.memory_space<smem>>
    %c8 = arith.constant 8 : index
    %75 = memref.load %arg1[%c8] : memref<28xf32, #tpu.memory_space<smem>>
    %c12 = arith.constant 12 : index
    %76 = memref.load %arg1[%c12] : memref<28xf32, #tpu.memory_space<smem>>
    %c16 = arith.constant 16 : index
    %77 = memref.load %arg1[%c16] : memref<28xf32, #tpu.memory_space<smem>>
    %c20 = arith.constant 20 : index
    %78 = memref.load %arg1[%c20] : memref<28xf32, #tpu.memory_space<smem>>
    %c24 = arith.constant 24 : index
    %79 = memref.load %arg1[%c24] : memref<28xf32, #tpu.memory_space<smem>>
    %80 = vector.broadcast %74 : f32 to vector<8x128xf32>
    %81 = vector.broadcast %73 : f32 to vector<8x128xf32>
    %82 = arith.select %2, %80, %81 : vector<8x128xi1>, vector<8x128xf32>
    %83 = vector.broadcast %75 : f32 to vector<8x128xf32>
    %84 = arith.select %4, %83, %82 : vector<8x128xi1>, vector<8x128xf32>
    %85 = vector.broadcast %76 : f32 to vector<8x128xf32>
    %86 = arith.select %6, %85, %84 : vector<8x128xi1>, vector<8x128xf32>
    %87 = vector.broadcast %77 : f32 to vector<8x128xf32>
    %88 = arith.select %8, %87, %86 : vector<8x128xi1>, vector<8x128xf32>
    %89 = vector.broadcast %78 : f32 to vector<8x128xf32>
    %90 = arith.select %10, %89, %88 : vector<8x128xi1>, vector<8x128xf32>
    %91 = vector.broadcast %79 : f32 to vector<8x128xf32>
    %92 = arith.select %12, %91, %90 : vector<8x128xi1>, vector<8x128xf32>
    %cst_7 = arith.constant 0.307692319 : f32
    %cst_8 = arith.constant 0.230769232 : f32
    %93 = vector.broadcast %cst_7 : f32 to vector<8x128xf32>
    %94 = vector.broadcast %cst_8 : f32 to vector<8x128xf32>
    %95 = arith.select %2, %93, %94 : vector<8x128xi1>, vector<8x128xf32>
    %cst_9 = arith.constant 0.384615391 : f32
    %96 = vector.broadcast %cst_9 : f32 to vector<8x128xf32>
    %97 = arith.select %4, %96, %95 : vector<8x128xi1>, vector<8x128xf32>
    %cst_10 = arith.constant 0.461538464 : f32
    %98 = vector.broadcast %cst_10 : f32 to vector<8x128xf32>
    %99 = arith.select %6, %98, %97 : vector<8x128xi1>, vector<8x128xf32>
    %cst_11 = arith.constant 0.538461566 : f32
    %100 = vector.broadcast %cst_11 : f32 to vector<8x128xf32>
    %101 = arith.select %8, %100, %99 : vector<8x128xi1>, vector<8x128xf32>
    %cst_12 = arith.constant 0.615384638 : f32
    %102 = vector.broadcast %cst_12 : f32 to vector<8x128xf32>
    %103 = arith.select %10, %102, %101 : vector<8x128xi1>, vector<8x128xf32>
    %cst_13 = arith.constant 0.692307711 : f32
    %104 = vector.broadcast %cst_13 : f32 to vector<8x128xf32>
    %105 = arith.select %12, %104, %103 : vector<8x128xi1>, vector<8x128xf32>
    %106 = arith.subf %0, %105 : vector<8x128xf32>
    %107 = arith.mulf %32, %106 : vector<8x128xf32>
    %108 = arith.addf %107, %52 : vector<8x128xf32>
    %109 = arith.mulf %108, %106 : vector<8x128xf32>
    %110 = arith.addf %109, %72 : vector<8x128xf32>
    %111 = arith.mulf %110, %106 : vector<8x128xf32>
    %112 = arith.addf %111, %92 : vector<8x128xf32>
    %c0_14 = arith.constant 0 : index
    %c0_15 = arith.constant 0 : index
    %113 = vector.load %arg3[%c0_14, %c0_15] : memref<8x128xf32, #tpu.memory_space<vmem>>, vector<8x128xf32>
    tpu.vector_store %arg3[%c0_14, %c0_15], %112 {strides = array<i32>} : memref<8x128xf32, #tpu.memory_space<vmem>>, vector<8x128xf32>,
    return
  }
  func.func @transform_0(%arg0: i32) -> i32 {
    %c0_i32 = arith.constant 0 : i32
    %c0_i32_0 = arith.constant 0 : i32
    return %c0_i32 : i32
  }
  func.func @transform_1(%arg0: i32) -> (i32, i32) {
    %c0_i32 = arith.constant 0 : i32
    %c0_i32_0 = arith.constant 0 : i32
    return %arg0, %c0_i32 : i32, i32
  }
  func.func @transform_2(%arg0: i32) -> (i32, i32) {
    %c0_i32 = arith.constant 0 : i32
    %c0_i32_0 = arith.constant 0 : i32
    return %arg0, %c0_i32 : i32, i32
  }
}

</mosaic_0001>

<llo_original>
// kernel: learnable_spline_activation.1
$region0: #{learnable_spline_activation.1}
  #allocation0 [shape = 'u32[]', space=smem, size = 0x4, offset = 0x4, fixed_abs, tag = 'smem constant byte address 0x4 - core index']
  #allocation1 [shape = 'u32[144,128]{1,0:T(1,128)}', space=vmem, size = 0x12000, scoped, tag = 'internal scratch']
  %s0 = inlined_call_operand.vmem [shape: f32[28], index: 0, kind: input, shape index: {}]
  %s1 = inlined_call_operand.vmem [shape: f32[16,128], index: 1, kind: input, shape index: {}]
  %s2 = inlined_call_operand.vmem [shape: f32[16,128], index: 2, kind: output, shape index: {}]
  %s3 = sld [smem:[#allocation0]]
  $region45: #{learnable_spline_activation.1} parent=0
    _
  %s5 = ssub.s32 1, %s3
  %s6 = scalar_select 0, %s5, %s3
  $region1: #{learnable_spline_activation.1} parent=0
    #allocation2 [shape = 'u8[512]{0}', space=smem, size = 0x200, scoped, tag = 'input window, operand 0, single buffered']
    #allocation3 [shape = 's32[2]{0}', space=sflag, size = 0x8, scoped, tag = 'scoped memory for learnable_spline_activation.1']
    %7 = vsyncpa [#allocation3], 0
    loop: start=0, step=1, limit=4
    $region2: #{learnable_spline_activation.1} parent=1 // loop_pre_header
      _
    $region3: #{learnable_spline_activation.1} parent=1 // loop_header
      %s9 = sphi 0, %s13
      %p10 = scmp.ge.s32.totalorder %s9, 4
      %s17 = sphi 0, %s17
      %s19 = sphi 0, %s17
      %s20 = sphi 0, %s19
      %s34 = sphi 0, %s20
      %s40 = sphi 0, %s42
      %s43 = sphi 0, %s40
      %s44 = sphi 0, %s43
      %s60 = sphi 0, %s44
      %s66 = sphi 0, %s68
      %s69 = sphi 0, %s66
      %s70 = sphi 0, %s69
      %s86 = sphi 0, %s70
    $region4: #{learnable_spline_activation.1} parent=1 // loop_header_branch
      %12 = sbr.rel (%p10) target = $region8
    $region5: #{learnable_spline_activation.1} parent=1 // loop_body
      %s14 = ssub.s32 %s9, 1
      %s15 = ssub.s32 %s9, 2
      %s16 = sadd.s32 %s9, 1
      %s18 = sadd.s32 %s17, 1
      %p21 = scmp.eq.s32.totalorder %s9, 1
      %p22 = scmp.ne.s32.totalorder %s17, %s19
      %p23 = scmp.eq.s32.totalorder %s9, 0
      %p24 = por %p22, %p23
      %p25 = scmp.ne.s32.totalorder %s17, %s19
      %p26 = scmp.eq.s32.totalorder %s14, 1
      %p27 = por %p25, %p26
      %p28 = scmp.ne.s32.totalorder %s19, %s20
      %p29 = scmp.eq.s32.totalorder %s14, 0
      %p30 = por %p28, %p29
      %p31 = scmp.ne.s32.totalorder %s19, %s20
      %p32 = scmp.eq.s32.totalorder %s15, 1
      %p33 = por %p31, %p32
      %p35 = scmp.ne.s32.totalorder %s20, %s34
      %p36 = scmp.eq.s32.totalorder %s15, 0
      %p37 = por %p35, %p36
      %s38 = ssub.s32 %s9, %s16
      %p39 = scmp.eq.s32.totalorder %s38, 0
      %s41 = sadd.s32 %s40, 1
      %s42 = scalar_select %p39, %s40, %s41
      %p45 = pneg %p39
      %p46 = scmp.eq.s32.totalorder %s9, 1
      %p47 = por %p45, %p46
      %p48 = scmp.ne.s32.totalorder %s40, %s43
      %p49 = scmp.eq.s32.totalorder %s9, 0
      %p50 = por %p48, %p49
      %p51 = scmp.ne.s32.totalorder %s40, %s43
      %p52 = scmp.eq.s32.totalorder %s14, 1
      %p53 = por %p51, %p52
      %p54 = scmp.ne.s32.totalorder %s43, %s44
      %p55 = scmp.eq.s32.totalorder %s14, 0
      %p56 = por %p54, %p55
      %p57 = scmp.ne.s32.totalorder %s43, %s44
      %p58 = scmp.eq.s32.totalorder %s15, 1
      %p59 = por %p57, %p58
      %p61 = scmp.ne.s32.totalorder %s44, %s60
      %p62 = scmp.eq.s32.totalorder %s15, 0
      %p63 = por %p61, %p62
      %s64 = ssub.s32 %s9, %s16
      %p65 = scmp.eq.s32.totalorder %s64, 0
      %s67 = sadd.s32 %s66, 1
      %s68 = scalar_select %p65, %s66, %s67
      %p71 = pneg %p65
      %p72 = scmp.eq.s32.totalorder %s9, 1
      %p73 = por %p71, %p72
      %p74 = scmp.ne.s32.totalorder %s66, %s69
      %p75 = scmp.eq.s32.totalorder %s9, 0
      %p76 = por %p74, %p75
      %p77 = scmp.ne.s32.totalorder %s66, %s69
      %p78 = scmp.eq.s32.totalorder %s14, 1
      %p79 = por %p77, %p78
      %p80 = scmp.ne.s32.totalorder %s69, %s70
      %p81 = scmp.eq.s32.totalorder %s14, 0
      %p82 = por %p80, %p81
      %p83 = scmp.ne.s32.totalorder %s69, %s70
      %p84 = scmp.eq.s32.totalorder %s15, 1
      %p85 = por %p83, %p84
      %p87 = scmp.ne.s32.totalorder %s70, %s86
      %p88 = scmp.eq.s32.totalorder %s15, 0
      %p89 = por %p87, %p88
      %p90 = scmp.le.s32.totalorder 1, %s9
      %p91 = scmp.lt.s32.totalorder %s9, 3
      %p92 = pnand %p90, %p91
      %p93 = pneg %p92
      // Predicated region
      $region9: #{learnable_spline_activation.1} parent=5 // pred_check
        _
      $region10: #{learnable_spline_activation.1} parent=5 // pred_check_branch
        %95 = sbr.rel (%p92) target = $region12
      $region11: #{learnable_spline_activation.1} parent=5 // pred_region
        %s96 = ssub.s32 %s9, 1
        // Predicated region
        $region13: #{learnable_spline_activation.1} parent=11 // pred_check
          %p97 = pneg %p30
        $region14: #{learnable_spline_activation.1} parent=11 // pred_check_branch
          %99 = sbr.rel (%p97) target = $region16
        $region15: #{learnable_spline_activation.1} parent=11 // pred_region
          %s101 = ssub.s32 16, 16
          %102 = vsyncadd [#allocation3], %s101
          %s104 = sshll.u32 %s0, 4
          %s105 = int_to_ptr.vmem [resolvable:$true] %s104
          %107 = dma.vmem_to_smem %s105, 16, [#allocation2], [#allocation3]
        $region16: #{learnable_spline_activation.1} parent=11 // pred_fallthru
          _
      $region12: #{learnable_spline_activation.1} parent=5 // pred_fallthru
        _
      %p108 = scmp.lt.s32.totalorder %s9, 2
      // Predicated region
      $region17: #{learnable_spline_activation.1} parent=5 // pred_check
        %p109 = pneg %p108
      $region18: #{learnable_spline_activation.1} parent=5 // pred_check_branch
        %111 = sbr.rel (%p109) target = $region20
      $region19: #{learnable_spline_activation.1} parent=5 // pred_region
        // Predicated region
        $region21: #{learnable_spline_activation.1} parent=19 // pred_check
          %p112 = pneg %p50
        $region22: #{learnable_spline_activation.1} parent=19 // pred_check_branch
          %114 = sbr.rel (%p112) target = $region24
        $region23: #{learnable_spline_activation.1} parent=19 // pred_region
          %p115 = scmp.lt.s32.totalorder %s9, 1
          %s116 = scalar_select %p115, %s9, 1
          %s117 = smul.addr %s116, 8
          %s118 = scalar_lea.vmem %s1, %s117
        $region24: #{learnable_spline_activation.1} parent=19 // pred_fallthru
          _
      $region20: #{learnable_spline_activation.1} parent=5 // pred_fallthru
        _
      %p119 = scmp.le.s32.totalorder 1, %s9
      %p120 = scmp.lt.s32.totalorder %s9, 3
      %p121 = pnand %p119, %p120
      %p122 = pneg %p121
      // Predicated region
      $region25: #{learnable_spline_activation.1} parent=5 // pred_check
        _
      $region26: #{learnable_spline_activation.1} parent=5 // pred_check_branch
        %124 = sbr.rel (%p121) target = $region28
      $region27: #{learnable_spline_activation.1} parent=5 // pred_region
        %s125 = ssub.s32 %s9, 1
        // Predicated region
        $region29: #{learnable_spline_activation.1} parent=27 // pred_check
          %p126 = pneg %p30
        $region30: #{learnable_spline_activation.1} parent=27 // pred_check_branch
          %128 = sbr.rel (%p126) target = $region32
        $region31: #{learnable_spline_activation.1} parent=27 // pred_region
          %129 = dma.done [#allocation3], 16
        $region32: #{learnable_spline_activation.1} parent=27 // pred_fallthru
          _
        %130 = sfence
        %p131 = pneg %p30
        %p132 = pneg %p27
        %p133 = scmp.lt.s32.totalorder %s14, 1
        %s134 = scalar_select %p133, %s14, 1
        %s135 = smul.addr %s134, 8
        %s136 = scalar_lea.vmem %s1, %s135
        %p137 = pneg %p56
        %p138 = pneg %p53
        %p139 = pneg %p82
        %p140 = pneg %p79
        %p141 = scmp.lt.s32.totalorder %s14, 1
        %s142 = scalar_select %p141, %s14, 1
        %s143 = smul.addr %s142, 8
        %s144 = scalar_lea.vmem %s2, %s143
        %p145 = scmp.lt.s32.totalorder %s14, 1
        %s146 = scalar_select %p145, %s14, 1
        %s147 = smul.addr %s146, 8
        %s148 = scalar_lea.vmem %s1, %s147
        %p149 = scmp.lt.s32.totalorder %s14, 1
        %s150 = scalar_select %p149, %s14, 1
        %s151 = smul.addr %s150, 8
        %s152 = scalar_lea.vmem %s2, %s151
        %v153 = vld [vmem:[%s148] sm:$0xff]
        %vm154 = vcmp.ge.f32.partialorder %v153, 0.30769232
        %vm155 = vcmp.ge.f32.partialorder %v153, 0.3846154
        %vm156 = vcmp.ge.f32.partialorder %v153, 0.46153846
        %vm157 = vcmp.ge.f32.partialorder %v153, 0.53846157
        %vm158 = vcmp.ge.f32.partialorder %v153, 0.61538464
        %vm159 = vcmp.ge.f32.partialorder %v153, 0.6923077
        %s160 = sld [smem:[#allocation2 + $0x3]]
        %s161 = sld [smem:[#allocation2 + $0x7]]
        %s162 = sld [smem:[#allocation2 + $0xb]]
        %s163 = sld [smem:[#allocation2 + $0xf]]
        %s164 = sld [smem:[#allocation2 + $0x13]]
        %s165 = sld [smem:[#allocation2 + $0x17]]
        %s166 = sld [smem:[#allocation2 + $0x1b]]
        %v167 = vstv %s161
        %v168 = vstv %s160
        %v169 = vsel %vm154, %v167, %v168
        %v170 = vstv %s162
        %v171 = vsel %vm155, %v170, %v169
        %v172 = vstv %s163
        %v173 = vsel %vm156, %v172, %v171
        %v174 = vstv %s164
        %v175 = vsel %vm157, %v174, %v173
        %v176 = vstv %s165
        %v177 = vsel %vm158, %v176, %v175
        %v178 = vstv %s166
        %v179 = vsel %vm159, %v178, %v177
        %s180 = sld [smem:[#allocation2 + $0x2]]
        %s181 = sld [smem:[#allocation2 + $0x6]]
        %s182 = sld [smem:[#allocation2 + $0xa]]
        %s183 = sld [smem:[#allocation2 + $0xe]]
        %s184 = sld [smem:[#allocation2 + $0x12]]
        %s185 = sld [smem:[#allocation2 + $0x16]]
        %s186 = sld [smem:[#allocation2 + $0x1a]]
        %v187 = vstv %s181
        %v188 = vstv %s180
        %v189 = vsel %vm154, %v187, %v188
        %v190 = vstv %s182
        %v191 = vsel %vm155, %v190, %v189
        %v192 = vstv %s183
        %v193 = vsel %vm156, %v192, %v191
        %v194 = vstv %s184
        %v195 = vsel %vm157, %v194, %v193
        %v196 = vstv %s185
        %v197 = vsel %vm158, %v196, %v195
        %v198 = vstv %s186
        %v199 = vsel %vm159, %v198, %v197
        %s200 = sld [smem:[#allocation2 + $0x1]]
        %s201 = sld [smem:[#allocation2 + $0x5]]
        %s202 = sld [smem:[#allocation2 + $0x9]]
        %s203 = sld [smem:[#allocation2 + $0xd]]
        %s204 = sld [smem:[#allocation2 + $0x11]]
        %s205 = sld [smem:[#allocation2 + $0x15]]
        %s206 = sld [smem:[#allocation2 + $0x19]]
        %v207 = vstv %s201
        %v208 = vstv %s200
        %v209 = vsel %vm154, %v207, %v208
        %v210 = vstv %s202
        %v211 = vsel %vm155, %v210, %v209
        %v212 = vstv %s203
        %v213 = vsel %vm156, %v212, %v211
        %v214 = vstv %s204
        %v215 = vsel %vm157, %v214, %v213
        %v216 = vstv %s205
        %v217 = vsel %vm158, %v216, %v215
        %v218 = vstv %s206
        %v219 = vsel %vm159, %v218, %v217
        %s220 = sld [smem:[#allocation2]]
        %s221 = sld [smem:[#allocation2 + $0x4]]
        %s222 = sld [smem:[#allocation2 + $0x8]]
        %s223 = sld [smem:[#allocation2 + $0xc]]
        %s224 = sld [smem:[#allocation2 + $0x10]]
        %s225 = sld [smem:[#allocation2 + $0x14]]
        %s226 = sld [smem:[#allocation2 + $0x18]]
        %v227 = vstv %s221
        %v228 = vstv %s220
        %v229 = vsel %vm154, %v227, %v228
        %v230 = vstv %s222
        %v231 = vsel %vm155, %v230, %v229
        %v232 = vstv %s223
        %v233 = vsel %vm156, %v232, %v231
        %v234 = vstv %s224
        %v235 = vsel %vm157, %v234, %v233
        %v236 = vstv %s225
        %v237 = vsel %vm158, %v236, %v235
        %v238 = vstv %s226
        %v239 = vsel %vm159, %v238, %v237
        %v240 = vsel %vm154, 0.30769232, 0.23076923
        %v241 = vsel %vm155, 0.3846154, %v240
        %v242 = vsel %vm156, 0.46153846, %v241
        %v243 = vsel %vm157, 0.53846157, %v242
        %v244 = vsel %vm158, 0.61538464, %v243
        %v245 = vsel %vm159, 0.6923077, %v244
        %v246 = vsub.f32 %v153, %v245
        %v247 = vmul.f32 %v179, %v246
        %v248 = vadd.f32 %v247, %v199
        %v249 = vmul.f32 %v248, %v246
        %v250 = vadd.f32 %v249, %v219
        %v251 = vmul.f32 %v250, %v246
        %v252 = vadd.f32 %v251, %v239
        %253 = vst [vmem:[%s152] sm:$0xff] %v252
        %p254 = scmp.lt.s32.totalorder %s14, 1
        %s255 = scalar_select %p254, %s14, 1
        %s256 = smul.addr %s255, 8
        %s257 = scalar_lea.vmem %s2, %s256
        // Predicated region
        $region33: #{learnable_spline_activation.1} parent=27 // pred_check
          %p258 = pneg %p79
        $region34: #{learnable_spline_activation.1} parent=27 // pred_check_branch
          %260 = sbr.rel (%p258) target = $region36
        $region35: #{learnable_spline_activation.1} parent=27 // pred_region
          _
        $region36: #{learnable_spline_activation.1} parent=27 // pred_fallthru
          _
      $region28: #{learnable_spline_activation.1} parent=5 // pred_fallthru
        _
      %p261 = scmp.le.s32.totalorder 2, %s9
      // Predicated region
      $region37: #{learnable_spline_activation.1} parent=5 // pred_check
        %p262 = pneg %p261
      $region38: #{learnable_spline_activation.1} parent=5 // pred_check_branch
        %264 = sbr.rel (%p262) target = $region40
      $region39: #{learnable_spline_activation.1} parent=5 // pred_region
        %s265 = ssub.s32 %s9, 2
        // Predicated region
        $region41: #{learnable_spline_activation.1} parent=39 // pred_check
          %p266 = pneg %p85
        $region42: #{learnable_spline_activation.1} parent=39 // pred_check_branch
          %268 = sbr.rel (%p266) target = $region44
        $region43: #{learnable_spline_activation.1} parent=39 // pred_region
          %p269 = scmp.lt.s32.totalorder %s15, 1
          %s270 = scalar_select %p269, %s15, 1
          %s271 = smul.addr %s270, 8
          %s272 = scalar_lea.vmem %s2, %s271
        $region44: #{learnable_spline_activation.1} parent=39 // pred_fallthru
          _
      $region40: #{learnable_spline_activation.1} parent=5 // pred_fallthru
        _
    $region6: #{learnable_spline_activation.1} parent=1 // loop_footer
      %s13 = sadd.s32 1, %s9
    $region7: #{learnable_spline_activation.1} parent=1 // loop_footer_branch
      %8 = sbr.rel target = $region3
    $region8: #{learnable_spline_activation.1} parent=1 // loop_exit
      _
    %273 = vsyncpa [#allocation3], 1
    %s274 = scalar_lea.sflag [#allocation3], 1
    %275 = vsyncpa %s274, 1

</llo_original>
